<compile_context>
chip_gen: v6e
topology: v6e:2x2x1
jax: 0.10.0
libtpu: 0.0.40
codegen_flags: <defaults>
</compile_context>

<pallas_src>
import jax
import jax.numpy as jnp
import numpy as np
from jax.experimental import pallas as pl
from jax.experimental.pallas import tpu as pltpu

_LANE = 128      # vreg lane width
_SUBLANE = 8     # f32 sublane count


def _h_sigmoid_kernel(x_ref, o_ref):
    x = x_ref[...]
    # ReLU6(x + 3) / 6  ==  clip(x + 3, 0, 6) * (1/6)
    y = jnp.clip(x + 3.0, 0.0, 6.0) * (1.0 / 6.0)
    o_ref[...] = y.astype(o_ref.dtype)


def h_sigmoid(x, *, max_block_rows=2048):
    """Elementwise h_sigmoid via a single lane-dense Pallas kernel.

    Works for any input shape/layout (the op is elementwise, so we flatten to
    a (rows, 128) lane-dense view; contiguous reshape is free in XLA).
    """
    orig_shape = x.shape
    orig_dtype = x.dtype

    flat = x.reshape(-1)
    n = flat.shape[0]

    # Lane-dense 2D view, sublane-aligned rows.
    rows = (n + _LANE - 1) // _LANE
    rows = ((rows + _SUBLANE - 1) // _SUBLANE) * _SUBLANE
    padded = rows * _LANE
    if padded != n:
        # Only hit for sizes not divisible by 1024; the example shape is exact.
        flat = jnp.pad(flat, (0, padded - n))
    x2d = flat.reshape(rows, _LANE)

    # Largest block of rows that evenly divides `rows` (single grid step for
    # small inputs; tiled + double-buffered for large ones).
    block_rows = rows
    if block_rows > max_block_rows:
        block_rows = max_block_rows
        while rows % block_rows != 0:
            block_rows -= _SUBLANE  # terminates: rows is a multiple of 8

    grid = (rows // block_rows,)

    out2d = pl.pallas_call(
        _h_sigmoid_kernel,
        out_shape=jax.ShapeDtypeStruct((rows, _LANE), orig_dtype),
        grid=grid,
        in_specs=[pl.BlockSpec((block_rows, _LANE), lambda i: (i, 0))],
        out_specs=pl.BlockSpec((block_rows, _LANE), lambda i: (i, 0)),
        compiler_params=pltpu.CompilerParams(
            dimension_semantics=("parallel",)),
    )(x2d)

    out = out2d.reshape(-1)
    if padded != n:
        out = out[:n]
    return out.reshape(orig_shape)


def _ref_h_sigmoid(x):
    return jnp.clip(x + 3.0, 0.0, 6.0) / 6.0


if __name__ == "__main__":
    # Shape consistent with where h_sigmoid is used in MobileNetV3 (NCHW
    # activations): batch=2, channels=4, spatial=16x16.
    key = jax.random.PRNGKey(0)
    x = jax.random.normal(key, (2, 4, 16, 16), jnp.float32) * 4.0

    out = h_sigmoid(x)
    out = jax.block_until_ready(out)

    ref = _ref_h_sigmoid(x)
    np.testing.assert_allclose(np.asarray(out), np.asarray(ref),
                               rtol=1e-6, atol=1e-6)

    # Also exercise a non-1024-multiple / multi-step path for robustness.
    x2 = jax.random.normal(jax.random.PRNGKey(1), (3, 5, 7, 11), jnp.float32)
    out2 = jax.block_until_ready(h_sigmoid(x2, max_block_rows=8))
    np.testing.assert_allclose(np.asarray(out2),
                               np.asarray(_ref_h_sigmoid(x2)),
                               rtol=1e-6, atol=1e-6)

    print("KERNEL_OK")
</pallas_src>

<mosaic_0001>
module attributes {stable_mosaic.version = 11 : i64} {
  func.func @_h_sigmoid_kernel(%arg0: i32, %arg1: memref<16x128xf32, #tpu.memory_space<vmem>>, %arg2: memref<16x128xf32, #tpu.memory_space<vmem>>) attributes {dimension_semantics = [#tpu.dimension_semantics<parallel>], iteration_bounds = array<i64: 1>, scalar_prefetch = 0 : i64, scratch_operands = 0 : i64, tpu.core_type = #tpu.core_type<tc>, window_params = [{transform_indices = @transform_0, window_bounds = array<i64: 16, 128>}, {transform_indices = @transform_1, window_bounds = array<i64: 16, 128>}]} {
    %c0 = arith.constant 0 : index
    %c0_0 = arith.constant 0 : index
    %0 = vector.load %arg1[%c0, %c0_0] : memref<16x128xf32, #tpu.memory_space<vmem>>, vector<16x128xf32>
    %cst = arith.constant 3.000000e+00 : f32
    %1 = vector.broadcast %cst : f32 to vector<16x128xf32>
    %2 = arith.addf %0, %1 : vector<16x128xf32>
    %cst_1 = arith.constant 0.000000e+00 : f32
    %cst_2 = arith.constant 6.000000e+00 : f32
    %3 = vector.broadcast %cst_1 : f32 to vector<16x128xf32>
    %4 = arith.maximumf %3, %2 : vector<16x128xf32>
    %5 = vector.broadcast %cst_2 : f32 to vector<16x128xf32>
    %6 = arith.minimumf %5, %4 : vector<16x128xf32>
    %cst_3 = arith.constant 0.166666672 : f32
    %7 = vector.broadcast %cst_3 : f32 to vector<16x128xf32>
    %8 = arith.mulf %6, %7 : vector<16x128xf32>
    %c0_4 = arith.constant 0 : index
    %c0_5 = arith.constant 0 : index
    %9 = vector.load %arg2[%c0_4, %c0_5] : memref<16x128xf32, #tpu.memory_space<vmem>>, vector<16x128xf32>
    tpu.vector_store %arg2[%c0_4, %c0_5], %8 {strides = array<i32>} : memref<16x128xf32, #tpu.memory_space<vmem>>, vector<16x128xf32>,
    return
  }
  func.func @transform_0(%arg0: i32) -> (i32, i32) {
    %c0_i32 = arith.constant 0 : i32
    %c0_i32_0 = arith.constant 0 : i32
    return %arg0, %c0_i32 : i32, i32
  }
  func.func @transform_1(%arg0: i32) -> (i32, i32) {
    %c0_i32 = arith.constant 0 : i32
    %c0_i32_0 = arith.constant 0 : i32
    return %arg0, %c0_i32 : i32, i32
  }
}

</mosaic_0001>

<llo_original>
// kernel: tpu_custom_call.1
$region0: #{tpu_custom_call.1}
  #allocation0 [shape = 'u32[]', space=smem, size = 0x4, offset = 0x4, fixed_abs, tag = 'smem constant byte address 0x4 - core index']
  #allocation1 [shape = 'u32[144,128]{1,0:T(1,128)}', space=vmem, size = 0x12000, scoped, tag = 'internal scratch']
  %s0 = inlined_call_operand.hbm [shape: f32[16,128], index: 0, kind: input, shape index: {}]
  %s1 = inlined_call_operand.hbm [shape: f32[16,128], index: 1, kind: output, shape index: {}]
  %s2 = sld [smem:[#allocation0]]
  $region18: #{tpu_custom_call.1} parent=0
    _
  %s4 = ssub.s32 1, %s2
  %s5 = scalar_select 0, %s4, %s2
  $region1: #{tpu_custom_call.1} parent=0
    #allocation2 [shape = 'u8[8192]{0}', space=vmem, size = 0x2000, scoped, tag = 'input window, operand 0, single buffered']
    #allocation3 [shape = 's32[1]{0}', space=sflag, size = 0x4, scoped, tag = 'scoped memory for tpu_custom_call.1']
    #allocation4 [shape = 's32[1]{0}', space=sflag, size = 0x4, scoped, tag = 'scoped memory for tpu_custom_call.1']
    #allocation5 [shape = 'u8[8192]{0}', space=vmem, size = 0x2000, scoped, tag = 'output window, operand 0, single buffered']
    %6 = vsyncpa [#allocation3], 0
    %7 = vsyncpa [#allocation4], 0
    // Predicated region
    $region2: #{tpu_custom_call.1} parent=1 // pred_check
      _
    $region3: #{tpu_custom_call.1} parent=1 // pred_check_branch
      %9 = sbr.rel (0) target = $region5
    $region4: #{tpu_custom_call.1} parent=1 // pred_region
      %s11 = ssub.s32 256, 256
      %12 = vsyncadd [#allocation3], %s11
      %s13 = sshll.u32 [#allocation2], 4
      %s14 = int_to_ptr.vmem [resolvable:$true] %s13
      %19 = dma.hbm_to_vmem [thread:$0]  %s0, 256, %s14, [#allocation3], 128, 128, 8
    $region5: #{tpu_custom_call.1} parent=1 // pred_fallthru
      _
    // Predicated region
    $region6: #{tpu_custom_call.1} parent=1 // pred_check
      _
    $region7: #{tpu_custom_call.1} parent=1 // pred_check_branch
      %21 = sbr.rel (0) target = $region9
    $region8: #{tpu_custom_call.1} parent=1 // pred_region
      %22 = dma.done [#allocation3], 256
    $region9: #{tpu_custom_call.1} parent=1 // pred_fallthru
      _
    %v23 = vld [vmem:[#allocation2] sm:$0xff]
    %v24 = vld [vmem:[#allocation2 + $0x8] sm:$0xff]
    %v25 = vadd.f32 %v23, 3.0
    %v26 = vadd.f32 %v24, 3.0
    %v27 = vmax.f32 %v25, 0.0
    %v28 = vmax.f32 %v26, 0.0
    %v29 = vmin.f32 %v27, 6.0
    %v30 = vmin.f32 %v28, 6.0
    %v31 = vmul.f32 %v29, 0.16666667
    %v32 = vmul.f32 %v30, 0.16666667
    %33 = vst [vmem:[#allocation5] sm:$0xff] %v31
    %34 = vst [vmem:[#allocation5 + $0x8] sm:$0xff] %v32
    // Predicated region
    $region10: #{tpu_custom_call.1} parent=1 // pred_check
      _
    $region11: #{tpu_custom_call.1} parent=1 // pred_check_branch
      %36 = sbr.rel (0) target = $region13
    $region12: #{tpu_custom_call.1} parent=1 // pred_region
      %s38 = ssub.s32 256, 256
      %39 = vsyncadd [#allocation4], %s38
      %s40 = sshll.u32 [#allocation5], 4
      %s41 = int_to_ptr.vmem [resolvable:$true] %s40
      %46 = dma.vmem_to_hbm [thread:$0]  %s41, 256, %s1, [#allocation4], 128, 128, 8
    $region13: #{tpu_custom_call.1} parent=1 // pred_fallthru
      _
    // Predicated region
    $region14: #{tpu_custom_call.1} parent=1 // pred_check
      _
    $region15: #{tpu_custom_call.1} parent=1 // pred_check_branch
      %48 = sbr.rel (0) target = $region17
    $region16: #{tpu_custom_call.1} parent=1 // pred_region
      %49 = dma.done [#allocation4], 256
    $region17: #{tpu_custom_call.1} parent=1 // pred_fallthru
      _
    %50 = vsyncpa [#allocation3], 1
    %51 = vsyncpa [#allocation4], 1

</llo_original>
